<compile_context>
chip_gen: v7x
topology: tpu7x:2x2x1
jax: 0.10.0
libtpu: 0.0.40
codegen_flags: <defaults>
</compile_context>

<pallas_src>
import jax
import jax.numpy as jnp
from jax import lax
from jax.experimental import pallas as pl
from jax.experimental.pallas import tpu as pltpu

LRELU_SLOPE = 0.1               # modules.LRELU_SLOPE
HALO = 128                      # lane-aligned halo block fetched on each side
TAP_DOT_MIN_CIN = 32            # Cin >= this -> K accumulating dots, else im2col


def get_padding(kernel_size, dilation=1):
    return (kernel_size * dilation - dilation) // 2


def _round_up(x, m):
    return ((x + m - 1) // m) * m


def _cdiv(a, b):
    return -(-a // b)


# ---------------------------------------------------------------------------
# Generation-aware VMEM budgets
# ---------------------------------------------------------------------------
_VMEM_CFG = None


def _vmem_cfg():
    """Returns (vmem_limit_bytes, per-call tile VMEM budget)."""
    global _VMEM_CFG
    if _VMEM_CFG is None:
        cap = 64 * 1024 * 1024
        try:
            cap = int(pltpu.get_tpu_info().vmem_capacity_bytes)
        except Exception:
            pass                              # conservative fallback (v7x-sized)
        limit = min((cap * 3) // 4, 96 * 1024 * 1024)   # 48 MiB v7x / 96 MiB v5e,v6e
        budget = min(cap // 4, 28 * 1024 * 1024)        # 16 MiB v7x / 28 MiB v5e,v6e
        _VMEM_CFG = (int(limit), int(budget))
    return _VMEM_CFG


def _pick_tile_t(t_out, per_col_bytes, fixed_bytes, batch):
    """Largest 128-multiple tile (<=4096) fitting the per-call VMEM budget."""
    _, budget = _vmem_cfg()
    tile = 4096
    while tile > 128 and tile * per_col_bytes + fixed_bytes > budget:
        tile //= 2
    tile = max(128, min(tile, _round_up(max(t_out, 1), 128)))
    if batch == 1 and t_out > 128:
        # keep >= 2 time tiles so both of v7x's TensorCores get work at B == 1
        tile = min(tile, max(128, _round_up(_cdiv(t_out, 2), 128)))
    return tile


# ---------------------------------------------------------------------------
# Shared in-kernel helper: conv taps as MXU matmuls (f32 accumulation)
#   out[:, c] = sum_k  W[:, k*cin:(k+1)*cin] @ a[:, off0 + c + k*dil]
# ---------------------------------------------------------------------------
def _taps_matmul(w2d, a, K, dil, out_w, cin, use_im2col, off0):
    op = w2d.dtype
    if K == 1:
        return jnp.dot(w2d, a[:, off0:off0 + out_w].astype(op),
                       preferred_element_type=jnp.float32)
    if use_im2col:
        slab = jnp.concatenate(
            [a[:, off0 + k * dil: off0 + k * dil + out_w] for k in range(K)], axis=0)
        return jnp.dot(w2d, slab.astype(op), preferred_element_type=jnp.float32)
    acc = None
    for k in range(K):
        wk = w2d[:, k * cin:(k + 1) * cin]
        part = jnp.dot(wk, a[:, off0 + k * dil: off0 + k * dil + out_w].astype(op),
                       preferred_element_type=jnp.float32)
        acc = part if acc is None else acc + part
    return acc


# ---------------------------------------------------------------------------
# Generic tiled conv1d kernel (conv_pre, cond(g)+x, polyphase upsample,
# conv_post):  (leaky_relu ∘) conv (+bias) (+residual) (∘ tanh)
# Input is UNPADDED; boundary zero-padding is emulated by in-kernel masking.
# ---------------------------------------------------------------------------
def _make_conv_kernel(K, dil, pad, tile_t, T_in, pre_slope, post_tanh,
                      has_res, use_im2col, cin):
    off0 = HALO - pad
    W = tile_t + 2 * HALO

    def kernel(xl_ref, xm_ref, xr_ref, w_ref, b_ref, *rest):
        if has_res:
            res_ref, o_ref = rest
        else:
            (o_ref,) = rest
        ti = pl.program_id(1)
        # window = [left halo | main tile | right halo], all 128-lane aligned
        win = jnp.concatenate([xl_ref[0], xm_ref[0], xr_ref[0]], axis=1)
        gcol = ti * tile_t - HALO + lax.broadcasted_iota(jnp.int32, (1, W), 1)
        win = jnp.where((gcol >= 0) & (gcol < T_in), win, jnp.zeros_like(win))
        if pre_slope is not None:
            win = jnp.where(win >= 0, win, pre_slope * win)    # lrelu(0)=0 -> exact
        acc = _taps_matmul(w_ref[...], win, K, dil, tile_t, cin, use_im2col, off0)
        acc = acc + b_ref[...]                                 # (Cout,1) f32 bias
        if has_res:
            acc = acc + res_ref[0].astype(jnp.float32)
        if post_tanh:
            acc = jnp.tanh(acc)
        o_ref[0] = acc.astype(o_ref.dtype)

    return kernel


def conv1d_tiled(x, w2d, b2d, *, K, dil=1, pad=0, T_out=None,
                 pre_slope=None, post_tanh=False, residual=None):
    """Tiled Conv1d. x: (B,Cin,T); w2d: (Cout, K*Cin); b2d: (Cout,1) f32."""
    B, Cin, T_in = x.shape
    Cout, KC = w2d.shape
    assert KC == K * Cin
    if T_out is None:
        T_out = T_in + 2 * pad - dil * (K - 1)
    left_need = pad
    right_need = dil * (K - 1) - pad
    assert 0 <= left_need <= HALO and 0 <= right_need <= HALO

    use_im2col = Cin < TAP_DOT_MIN_CIN
    dtb = x.dtype.itemsize
    per_col = dtb * (3 * Cin + 2 * Cout + (K * Cin if use_im2col else 0)) + 4 * Cout
    if residual is not None:
        per_col += 2 * dtb * Cout
    fixed = (2 * Cout * KC * dtb            # weight (double-buffered)
             + 4 * Cin * HALO * dtb         # halo blocks (double-buffered)
             + 8 * Cout + (1 << 20))
    tile_t = _pick_tile_t(T_out, per_col, fixed, B)
    nt = _cdiv(T_out, tile_t)
    hb = tile_t // HALO
    max_hblk = max(_cdiv(T_in, HALO) - 1, 0)
    max_mblk = max(_cdiv(T_in, tile_t) - 1, 0)

    in_specs = [
        pl.BlockSpec((1, Cin, HALO),
                     lambda bi, ti: (bi, 0, jnp.clip(ti * hb - 1, 0, max_hblk))),
        pl.BlockSpec((1, Cin, tile_t),
                     lambda bi, ti: (bi, 0, jnp.minimum(ti, max_mblk))),
        pl.BlockSpec((1, Cin, HALO),
                     lambda bi, ti: (bi, 0, jnp.minimum((ti + 1) * hb, max_hblk))),
        pl.BlockSpec((Cout, KC), lambda bi, ti: (0, 0)),
        pl.BlockSpec((Cout, 1), lambda bi, ti: (0, 0)),
    ]
    args = [x, x, x, w2d, b2d]
    if residual is not None:
        in_specs.append(pl.BlockSpec((1, Cout, tile_t), lambda bi, ti: (bi, 0, ti)))
        args.append(residual)

    limit, _ = _vmem_cfg()
    kern = _make_conv_kernel(K, dil, pad, tile_t, T_in, pre_slope, post_tanh,
                             residual is not None, use_im2col, Cin)
    return pl.pallas_call(
        kern,
        out_shape=jax.ShapeDtypeStruct((B, Cout, T_out), x.dtype),
        grid=(B, nt),
        in_specs=in_specs,
        out_specs=pl.BlockSpec((1, Cout, tile_t), lambda bi, ti: (bi, 0, ti)),
        compiler_params=pltpu.CompilerParams(
            dimension_semantics=("parallel", "parallel"),
            vmem_limit_bytes=limit),
    )(*args)


# ---------------------------------------------------------------------------
# Fused ResBlock1 (ALL dilation pairs) + optional branch accumulation:
#   x -> [lrelu -> c1(d) -> lrelu -> c2 -> +res] * len(dils)   (+ acc)
# The residual stream stays in VMEM (f32) across the pairs.
# ---------------------------------------------------------------------------
def _make_resblock_kernel(K, dils, tile_t, T_in, has_acc, use_im2col, ch):
    pads1 = tuple(get_padding(K, d) for d in dils)
    pad2 = get_padding(K, 1)
    offs = tuple(p1 + pad2 for p1 in pads1)
    OFF = sum(offs)
    W = tile_t + 2 * HALO
    npair = len(dils)

    def kernel(xl_ref, xm_ref, xr_ref, *rest):
        wrefs = rest[:4 * npair]
        rest = rest[4 * npair:]
        if has_acc:
            acc_ref, o_ref = rest
        else:
            (o_ref,) = rest
        ti = pl.program_id(1)
        win = jnp.concatenate([xl_ref[0], xm_ref[0], xr_ref[0]], axis=1)
        gcol = ti * tile_t - HALO + lax.broadcasted_iota(jnp.int32, (1, W), 1)
        win = jnp.where((gcol >= 0) & (gcol < T_in), win, jnp.zeros_like(win))
        start = HALO - OFF
        cur = win[:, start:start + tile_t + 2 * OFF].astype(jnp.float32)
        g0 = ti * tile_t - OFF                       # global column of cur[:, 0]
        for p, d in enumerate(dils):
            p1, off_p = pads1[p], offs[p]
            w1, b1, w2, b2 = (wrefs[4 * p + j] for j in range(4))
            Wc = cur.shape[1]
            Wn = Wc - 2 * off_p
            E1 = Wn + 2 * pad2
            a1 = jnp.where(cur >= 0, cur, LRELU_SLOPE * cur)
            xt = _taps_matmul(w1[...], a1, K, d, E1, ch, use_im2col, 0) + b1[...]
            # conv2 zero-pads its length-T input at the true sequence boundary
            gx = (g0 + p1) + lax.broadcasted_iota(jnp.int32, (1, E1), 1)
            xt = jnp.where((gx >= 0) & (gx < T_in), xt, 0.0)
            a2 = jnp.where(xt >= 0, xt, LRELU_SLOPE * xt)
            y = _taps_matmul(w2[...], a2, K, 1, Wn, ch, use_im2col, 0) + b2[...]
            cur = cur[:, off_p:off_p + Wn] + y       # residual add (f32)
            g0 = g0 + off_p
            if p + 1 < npair:                        # keep zero-padding exact for next pair
                gc = g0 + lax.broadcasted_iota(jnp.int32, (1, Wn), 1)
                cur = jnp.where((gc >= 0) & (gc < T_in), cur, 0.0)
        if has_acc:
            cur = cur + acc_ref[0].astype(jnp.float32)   # fused `xs += r`
        o_ref[0] = cur.astype(o_ref.dtype)

    return kernel


def resblock_fused(x, rb, acc=None):
    B, ch, T = x.shape
    K, dils = rb["K"], rb["dils"]
    assert K % 2 == 1, "ResBlock kernel sizes must be odd"
    pad2 = get_padding(K, 1)
    OFF = sum(get_padding(K, d) + pad2 for d in dils)
    assert OFF <= HALO, "fused ResBlock receptive field exceeds the 128-column halo"

    use_im2col = ch < TAP_DOT_MIN_CIN
    dtb = x.dtype.itemsize
    per_col = dtb * (7 * ch + (K * ch if use_im2col else 0)) + 20 * ch
    if acc is not None:
        per_col += 2 * dtb * ch
    fixed = (2 * len(dils) * 2 * ch * K * ch * dtb   # 2*npair weights, double-buffered
             + 4 * ch * HALO * dtb + 16 * len(dils) * ch + (1 << 20))
    tile_t = _pick_tile_t(T, per_col, fixed, B)
    nt = _cdiv(T, tile_t)
    hb = tile_t // HALO
    max_hblk = max(_cdiv(T, HALO) - 1, 0)
    max_mblk = max(_cdiv(T, tile_t) - 1, 0)

    in_specs = [
        pl.BlockSpec((1, ch, HALO),
                     lambda bi, ti: (bi, 0, jnp.clip(ti * hb - 1, 0, max_hblk))),
        pl.BlockSpec((1, ch, tile_t),
                     lambda bi, ti: (bi, 0, jnp.minimum(ti, max_mblk))),
        pl.BlockSpec((1, ch, HALO),
                     lambda bi, ti: (bi, 0, jnp.minimum((ti + 1) * hb, max_hblk))),
    ]
    args = [x, x, x]
    for pr in rb["pairs"]:
        for name in ("w1", "b1", "w2", "b2"):
            a = pr[name]
            in_specs.append(pl.BlockSpec(a.shape, lambda bi, ti: (0, 0)))
            args.append(a)
    if acc is not None:
        in_specs.append(pl.BlockSpec((1, ch, tile_t), lambda bi, ti: (bi, 0, ti)))
        args.append(acc)

    limit, _ = _vmem_cfg()
    kern = _make_resblock_kernel(K, dils, tile_t, T, acc is not None, use_im2col, ch)
    return pl.pallas_call(
        kern,
        out_shape=jax.ShapeDtypeStruct((B, ch, T), x.dtype),
        grid=(B, nt),
        in_specs=in_specs,
        out_specs=pl.BlockSpec((1, ch, tile_t), lambda bi, ti: (bi, 0, ti)),
        compiler_params=pltpu.CompilerParams(
            dimension_semantics=("parallel", "parallel"),
            vmem_limit_bytes=limit),
    )(*args)


# ---------------------------------------------------------------------------
# Raw parameters (PyTorch layouts) + precomputed kernel-ready parameters
# ---------------------------------------------------------------------------
def init_generator_params(key, *, initial_channel, resblock_kernel_sizes,
                          resblock_dilation_sizes, upsample_rates,
                          upsample_initial_channel, upsample_kernel_sizes,
                          gin_channels=0):
    keys = iter(jax.random.split(key, 512))

    def nrm(shape, scale=0.05):
        return scale * jax.random.normal(next(keys), shape, jnp.float32)

    p = {"num_kernels": len(resblock_kernel_sizes),
         "num_upsamples": len(upsample_rates)}
    p["conv_pre_w"] = nrm((7, upsample_initial_channel, initial_channel))   # (K,Cout,Cin)
    p["conv_pre_b"] = nrm((upsample_initial_channel,))
    if gin_channels:
        p["cond_w"] = nrm((1, upsample_initial_channel, gin_channels))
        p["cond_b"] = nrm((upsample_initial_channel,))
    ups = []
    for i, (u, k) in enumerate(zip(upsample_rates, upsample_kernel_sizes)):
        cin = upsample_initial_channel // 2 ** i
        cout = upsample_initial_channel // 2 ** (i + 1)
        ups.append({"w": nrm((cin, cout, k)),           # PyTorch ConvTranspose layout
                    "b": nrm((cout,)),
                    "stride": u, "padding": (k - u) // 2})
    p["ups"] = ups
    resblocks = []
    for i in range(len(upsample_rates)):
        ch = upsample_initial_channel // 2 ** (i + 1)
        for k, ds in zip(resblock_kernel_sizes, resblock_dilation_sizes):
            convs1, convs2 = [], []
            for d in ds:                                # modules.ResBlock1
                convs1.append({"w": nrm((k, ch, ch)), "b": nrm((ch,)),
                               "dilation": d, "padding": get_padding(k, d)})
                convs2.append({"w": nrm((k, ch, ch)), "b": nrm((ch,)),
                               "dilation": 1, "padding": get_padding(k, 1)})
            resblocks.append({"convs1": convs1, "convs2": convs2})
    p["resblocks"] = resblocks
    ch = upsample_initial_channel // 2 ** len(upsample_rates)
    p["conv_post_w"] = nrm((7, 1, ch))                  # bias=False
    return p


def _prep_conv(w, b, dtype, scale=1.0):
    """(K,Cout,Cin) -> im2col (Cout, K*Cin) + (Cout,1) f32 bias."""
    K, Cout, Cin = w.shape
    w2d = (jnp.transpose(w, (1, 0, 2)) * scale).reshape(Cout, K * Cin).astype(dtype)
    b2d = (jnp.zeros((Cout, 1), jnp.float32) if b is None
           else b.astype(jnp.float32).reshape(Cout, 1))
    return {"w": w2d, "b": b2d, "K": K, "pad": get_padding(K, 1)}


def _prep_conv_transpose(w_t, b, stride, padding, dtype, scale=1.0):
    """Polyphase decomposition of ConvTranspose1d (PyTorch (Cin,Cout,K) weight).

    Returns one unified weight (stride*Cout, U*Cin): rows [r*Cout,(r+1)*Cout)
    produce output phase r as a plain K=U, dil=1 conv on x with padding maxL.
    Exactly equivalent to zero-insertion, with `stride`x fewer FLOPs/HBM bytes.
    """
    Cin, Cout, K = w_t.shape
    s, p = stride, padding
    phases = []
    for r in range(s):
        k0 = (r + p) % s
        if k0 >= K:
            phases.append((k0, 0, 0, 0))
            continue
        Kr = (K - 1 - k0) // s + 1
        dr = (r + p - k0) // s
        phases.append((k0, Kr, dr, Kr - 1 - dr))
    maxL = max([L for (_, Kr, _, L) in phases if Kr > 0], default=0)
    U = max([maxL - L + Kr for (_, Kr, _, L) in phases if Kr > 0], default=1)
    Wu = jnp.zeros((s * Cout, U * Cin), jnp.float32)
    for r, (k0, Kr, _, Lr) in enumerate(phases):
        for jp in range(Kr):
            k = k0 + s * (Kr - 1 - jp)
            u = maxL - Lr + jp
            blk = (w_t[:, :, k] * scale).T                       # (Cout, Cin)
            Wu = Wu.at[r * Cout:(r + 1) * Cout, u * Cin:(u + 1) * Cin].set(blk)
    bu = jnp.tile(b.astype(jnp.float32), s).reshape(s * Cout, 1)
    return {"w": Wu.astype(dtype), "b": bu, "U": U, "maxL": maxL,
            "stride": s, "padding": p, "K": K, "Cout": Cout}


def prepare_generator_params(raw, dtype=jnp.bfloat16):
    nk = raw["num_kernels"]
    p = {"num_kernels": nk, "num_upsamples": raw["num_upsamples"], "dtype": dtype}
    p["conv_pre"] = _prep_conv(raw["conv_pre_w"], raw["conv_pre_b"], dtype)
    if "cond_w" in raw:
        p["cond"] = _prep_conv(raw["cond_w"], raw["cond_b"], dtype)
    ups = []
    for i, up in enumerate(raw["ups"]):
        # Fold the previous stage's `xs / num_kernels` into this stage's weights
        # (exact: leaky_relu is positively homogeneous, conv is linear).
        scale = 1.0 if i == 0 else 1.0 / nk
        ups.append(_prep_conv_transpose(up["w"], up["b"], up["stride"],
                                        up["padding"], dtype, scale=scale))
    p["ups"] = ups
    resblocks = []
    for rb in raw["resblocks"]:
        K = int(rb["convs1"][0]["w"].shape[0])
        ch = int(rb["convs1"][0]["w"].shape[1])
        dils = tuple(int(c["dilation"]) for c in rb["convs1"])
        pairs = []
        for c1, c2 in zip(rb["convs1"], rb["convs2"]):
            pairs.append({
                "w1": jnp.transpose(c1["w"], (1, 0, 2)).reshape(ch, K * ch).astype(dtype),
                "b1": c1["b"].astype(jnp.float32).reshape(ch, 1),
                "w2": jnp.transpose(c2["w"], (1, 0, 2)).reshape(ch, K * ch).astype(dtype),
                "b2": c2["b"].astype(jnp.float32).reshape(ch, 1)})
        resblocks.append({"K": K, "dils": dils, "pairs": pairs})
    p["resblocks"] = resblocks
    p["conv_post"] = _prep_conv(raw["conv_post_w"], None, dtype, scale=1.0 / nk)
    return p


# ---------------------------------------------------------------------------
# Forward pass
# ---------------------------------------------------------------------------
def upsample_poly(x, up, *, pre_slope):
    B, _, T = x.shape
    s, K, p, Cout = up["stride"], up["K"], up["padding"], up["Cout"]
    T_up = (T - 1) * s + K - 2 * p
    T_ph = _cdiv(T_up, s)
    y = conv1d_tiled(x, up["w"], up["b"], K=up["U"], dil=1, pad=up["maxL"],
                     T_out=T_ph, pre_slope=pre_slope)          # (B, s*Cout, T_ph)
    # TODO(synk): fuse this phase interleave into the kernel's output store.
    y = y.reshape(B, s, Cout, T_ph).transpose(0, 2, 3, 1).reshape(B, Cout, s * T_ph)
    return y[:, :, :T_up]


def generator_forward(params, x, g=None):
    dtype = params["dtype"]
    x = x.astype(dtype)
    cp = params["conv_pre"]
    x = conv1d_tiled(x, cp["w"], cp["b"], K=cp["K"], pad=cp["pad"])
    if g is not None and "cond" in params:
        cd = params["cond"]
        g = g.astype(dtype)
        if g.shape[-1] == 1:
            # global speaker embedding: tiny XLA matvec, broadcast-add over time
            c = (jnp.einsum("oi,bi->bo", cd["w"].astype(jnp.float32),
                            g[:, :, 0].astype(jnp.float32))
                 + cd["b"][:, 0][None])
            x = (x.astype(jnp.float32) + c[:, :, None]).astype(dtype)
        else:
            # x = cond(g) + x : 1x1 conv with the residual add fused in-kernel
            x = conv1d_tiled(g, cd["w"], cd["b"], K=cd["K"], pad=cd["pad"],
                             residual=x)
    nk = params["num_kernels"]
    for i in range(params["num_upsamples"]):
        # leaky_relu fused into the polyphase upsampling kernel
        x = upsample_poly(x, params["ups"][i], pre_slope=LRELU_SLOPE)
        xs = None
        for j in range(nk):
            # whole ResBlock1 fused + branch accumulation fused (xs += r)
            xs = resblock_fused(x, params["resblocks"][i * nk + j], acc=xs)
        # NOTE: `xs / num_kernels` is folded into the next consumer's weights.
        x = xs
    cpost = params["conv_post"]
    x = conv1d_tiled(x, cpost["w"], cpost["b"], K=cpost["K"], pad=cpost["pad"],
                     pre_slope=0.01, post_tanh=True)
    return x


# ---------------------------------------------------------------------------
# Pure-XLA reference (for correctness checks only)
# ---------------------------------------------------------------------------
def _ref_leaky(x, slope):
    return jnp.where(x >= 0, x, slope * x)


def _ref_conv1d(x, w, b, dilation, padding):
    w_oik = jnp.transpose(w, (1, 2, 0))                        # (Cout,Cin,K)
    y = lax.conv_general_dilated(
        x, w_oik, window_strides=(1,), padding=[(padding, padding)],
        rhs_dilation=(dilation,), dimension_numbers=("NCH", "OIH", "NCH"),
        precision=lax.Precision.HIGHEST)
    if b is not None:
        y = y + b.reshape(1, -1, 1)
    return y


def _ref_conv_transpose1d(x, w_t, b, stride, padding):
    Cin, Cout, K = w_t.shape
    B, _, T = x.shape
    L = (T - 1) * stride + 1
    xd = jnp.zeros((B, Cin, L), x.dtype).at[:, :, ::stride].set(x)
    w_conv = jnp.transpose(jnp.flip(w_t, 2), (2, 1, 0))        # (K,Cout,Cin)
    return _ref_conv1d(xd, w_conv, b, 1, K - 1 - padding)


def _ref_resblock1(x, rb):
    for c1, c2 in zip(rb["convs1"], rb["convs2"]):
        xt = _ref_conv1d(_ref_leaky(x, LRELU_SLOPE), c1["w"], c1["b"],
                         c1["dilation"], c1["padding"])
        xt = _ref_conv1d(_ref_leaky(xt, LRELU_SLOPE), c2["w"], c2["b"],
                         c2["dilation"], c2["padding"])
        x = xt + x
    return x


def reference_forward(raw, x, g=None):
    x = _ref_conv1d(x, raw["conv_pre_w"], raw["conv_pre_b"], 1, 3)
    if g is not None and "cond_w" in raw:
        x = x + _ref_conv1d(g, raw["cond_w"], raw["cond_b"], 1, 0)
    nk = raw["num_kernels"]
    for i in range(raw["num_upsamples"]):
        up = raw["ups"][i]
        x = _ref_leaky(x, LRELU_SLOPE)
        x = _ref_conv_transpose1d(x, up["w"], up["b"], up["stride"], up["padding"])
        xs = None
        for j in range(nk):
            r = _ref_resblock1(x, raw["resblocks"][i * nk + j])
            xs = r if xs is None else xs + r
        x = xs / nk
    x = _ref_leaky(x, 0.01)
    x = _ref_conv1d(x, raw["conv_post_w"], None, 1, 3)
    return jnp.tanh(x)


# ---------------------------------------------------------------------------
if __name__ == "__main__":
    key = jax.random.PRNGKey(0)
    kp, kx, kg, ka, kb = jax.random.split(key, 5)

    B, T = 2, 50
    initial_channel = 8
    gin_channels = 16
    cfg = dict(
        initial_channel=initial_channel,
        resblock_kernel_sizes=[3, 5],
        resblock_dilation_sizes=[[1, 3, 5], [1, 3, 5]],
        upsample_rates=[4, 4],
        upsample_initial_channel=64,
        upsample_kernel_sizes=[8, 8],
        gin_channels=gin_channels,
    )
    raw = init_generator_params(kp, **cfg)

    x = jax.random.normal(kx, (B, initial_channel, T), jnp.float32)
    g = jax.random.normal(kg, (B, gin_channels, T), jnp.float32)

    # ---- op-level checks (f32) against XLA references ----------------------
    p32 = prepare_generator_params(raw, jnp.float32)

    # conv_pre (im2col path, halo masking at both sequence edges)
    y_k = conv1d_tiled(x, p32["conv_pre"]["w"], p32["conv_pre"]["b"], K=7, pad=3)
    y_r = _ref_conv1d(x, raw["conv_pre_w"], raw["conv_pre_b"], 1, 3)
    assert float(jnp.max(jnp.abs(y_k - y_r))) < 2e-2, "conv_pre mismatch"

    # polyphase transposed conv (per-tap dot path, Cin=64)
    a = jax.random.normal(ka, (B, cfg["upsample_initial_channel"], T), jnp.float32)
    y_k = upsample_poly(a, p32["ups"][0], pre_slope=LRELU_SLOPE)
    y_r = _ref_conv_transpose1d(_ref_leaky(a, LRELU_SLOPE), raw["ups"][0]["w"],
                                raw["ups"][0]["b"], raw["ups"][0]["stride"],
                                raw["ups"][0]["padding"])
    assert y_k.shape == y_r.shape
    assert float(jnp.max(jnp.abs(y_k - y_r))) < 2e-2, "upsample mismatch"

    # fused 3-pair ResBlock1 (per-tap path, ch=32)
    ch0 = cfg["upsample_initial_channel"] // 2
    a2 = jax.random.normal(kb, (B, ch0, 200), jnp.float32)
    y_k = resblock_fused(a2, p32["resblocks"][0])
    y_r = _ref_resblock1(a2, raw["resblocks"][0])
    assert float(jnp.max(jnp.abs(y_k - y_r))) < 2e-2, "resblock mismatch"

    # fused ResBlock1 with branch accumulation (im2col path, ch=16)
    ch1 = cfg["upsample_initial_channel"] // 4
    a3 = jax.random.normal(kb, (B, ch1, 200), jnp.float32)
    accv = jax.random.normal(ka, (B, ch1, 200), jnp.float32)
    y_k = resblock_fused(a3, p32["resblocks"][2], acc=accv)
    y_r = _ref_resblock1(a3, raw["resblocks"][2]) + accv
    assert float(jnp.max(jnp.abs(y_k - y_r))) < 2e-2, "resblock+acc mismatch"

    # ---- full forward, f32, vs reference -----------------------------------
    expected_T = T
    for u in cfg["upsample_rates"]:
        expected_T *= u

    y32 = jax.block_until_ready(
        jax.jit(lambda xx, gg: generator_forward(p32, xx, gg))(x, g))
    y_ref = reference_forward(raw, x, g)
    assert y32.shape == (B, 1, expected_T), y32.shape
    assert y_ref.shape == y32.shape
    err = float(jnp.max(jnp.abs(y32 - y_ref)))
    assert err < 5e-3 + 5e-2 * float(jnp.max(jnp.abs(y_ref))), err

    # ---- global (T_g = 1) conditioning path ---------------------------------
    g1 = g[:, :, :1]
    y32_g1 = jax.block_until_ready(
        jax.jit(lambda xx, gg: generator_forward(p32, xx, gg))(x, g1))
    y_ref_g1 = reference_forward(raw, x, g1)
    err = float(jnp.max(jnp.abs(y32_g1 - y_ref_g1)))
    assert err < 5e-3 + 5e-2 * float(jnp.max(jnp.abs(y_ref_g1))), err

    # ---- full forward, bf16 storage (production configuration) -------------
    pbf = prepare_generator_params(raw, jnp.bfloat16)
    ybf = jax.block_until_ready(
        jax.jit(lambda xx, gg: generator_forward(pbf, xx, gg))(x, g))
    ybf32 = ybf.astype(jnp.float32)
    assert ybf.shape == (B, 1, expected_T)
    assert bool(jnp.all(jnp.isfinite(ybf32)))
    assert bool(jnp.all(jnp.abs(ybf32) <= 1.0))            # tanh output range

    print("KERNEL_OK")
</pallas_src>

<mosaic_0001>
module attributes {stable_mosaic.version = 11 : i64} {
  func.func @kernel(%arg0: i32, %arg1: i32, %arg2: memref<1x8x128xf32, #tpu.memory_space<vmem>>, %arg3: memref<1x8x128xf32, #tpu.memory_space<vmem>>, %arg4: memref<1x8x128xf32, #tpu.memory_space<vmem>>, %arg5: memref<64x56xf32, #tpu.memory_space<vmem>>, %arg6: memref<64x1xf32, #tpu.memory_space<vmem>>, %arg7: memref<1x64x128xf32, #tpu.memory_space<vmem>>) attributes {dimension_semantics = [#tpu.dimension_semantics<parallel>, #tpu.dimension_semantics<parallel>], iteration_bounds = array<i64: 2, 1>, scalar_prefetch = 0 : i64, scratch_operands = 0 : i64, tpu.core_type = #tpu.core_type<tc>, window_params = [{transform_indices = @transform_0, window_bounds = array<i64: 1, 8, 128>}, {transform_indices = @transform_1, window_bounds = array<i64: 1, 8, 128>}, {transform_indices = @transform_2, window_bounds = array<i64: 1, 8, 128>}, {pipeline_mode = #tpu.pipeline_mode<synchronous>, transform_indices = @transform_3, window_bounds = array<i64: 64, 56>}, {pipeline_mode = #tpu.pipeline_mode<synchronous>, transform_indices = @transform_4, window_bounds = array<i64: 64, 1>}, {transform_indices = @transform_5, window_bounds = array<i64: 1, 64, 128>}]} {
    %c0 = arith.constant 0 : index
    %c0_0 = arith.constant 0 : index
    %c0_1 = arith.constant 0 : index
    %0 = vector.load %arg2[%c0, %c0_0, %c0_1] : memref<1x8x128xf32, #tpu.memory_space<vmem>>, vector<1x8x128xf32>
    %1 = vector.shape_cast %0 : vector<1x8x128xf32> to vector<8x128xf32>
    %c0_2 = arith.constant 0 : index
    %c0_3 = arith.constant 0 : index
    %c0_4 = arith.constant 0 : index
    %2 = vector.load %arg3[%c0_2, %c0_3, %c0_4] : memref<1x8x128xf32, #tpu.memory_space<vmem>>, vector<1x8x128xf32>
    %3 = vector.shape_cast %2 : vector<1x8x128xf32> to vector<8x128xf32>
    %c0_5 = arith.constant 0 : index
    %c0_6 = arith.constant 0 : index
    %c0_7 = arith.constant 0 : index
    %4 = vector.load %arg4[%c0_5, %c0_6, %c0_7] : memref<1x8x128xf32, #tpu.memory_space<vmem>>, vector<1x8x128xf32>
    %5 = vector.shape_cast %4 : vector<1x8x128xf32> to vector<8x128xf32>
    %6 = tpu.concatenate %1, %3, %5 in 1 : vector<8x128xf32>, vector<8x128xf32>, vector<8x128xf32> -> vector<8x384xf32>
    %c128_i32 = arith.constant 128 : i32
    %7 = arith.muli %arg1, %c128_i32 : i32
    %c128_i32_8 = arith.constant 128 : i32
    %8 = arith.subi %7, %c128_i32_8 : i32
    %9 = tpu.iota {dimensions = array<i32: 1>} : vector<1x384xi32>
    %10 = vector.broadcast %8 : i32 to vector<1x384xi32>
    %11 = arith.addi %10, %9 : vector<1x384xi32>
    %c0_i32 = arith.constant 0 : i32
    %12 = vector.broadcast %c0_i32 : i32 to vector<1x384xi32>
    %13 = arith.cmpi sge, %11, %12 : vector<1x384xi32>
    %c50_i32 = arith.constant 50 : i32
    %14 = vector.broadcast %c50_i32 : i32 to vector<1x384xi32>
    %15 = arith.cmpi slt, %11, %14 : vector<1x384xi32>
    %16 = arith.andi %13, %15 : vector<1x384xi1>
    %cst = arith.constant 0.000000e+00 : f32
    %17 = vector.broadcast %cst : f32 to vector<8x384xf32>
    %18 = vector.shape_cast %16 : vector<1x384xi1> to vector<1x384xi1>
    %19 = vector.broadcast %18 : vector<1x384xi1> to vector<8x384xi1>
    %20 = arith.select %19, %6, %17 : vector<8x384xi1>, vector<8x384xf32>
    %c0_9 = arith.constant 0 : index
    %c0_10 = arith.constant 0 : index
    %21 = vector.load %arg5[%c0_9, %c0_10] : memref<64x56xf32, #tpu.memory_space<vmem>>, vector<64x56xf32>
    %22 = vector.extract_strided_slice %20 {offsets = [0, 125], sizes = [8, 128], strides = [1, 1]} : vector<8x384xf32> to vector<8x128xf32>
    %23 = vector.extract_strided_slice %20 {offsets = [0, 126], sizes = [8, 128], strides = [1, 1]} : vector<8x384xf32> to vector<8x128xf32>
    %24 = vector.extract_strided_slice %20 {offsets = [0, 127], sizes = [8, 128], strides = [1, 1]} : vector<8x384xf32> to vector<8x128xf32>
    %25 = vector.extract_strided_slice %20 {offsets = [0, 128], sizes = [8, 128], strides = [1, 1]} : vector<8x384xf32> to vector<8x128xf32>
    %26 = vector.extract_strided_slice %20 {offsets = [0, 129], sizes = [8, 128], strides = [1, 1]} : vector<8x384xf32> to vector<8x128xf32>
    %27 = vector.extract_strided_slice %20 {offsets = [0, 130], sizes = [8, 128], strides = [1, 1]} : vector<8x384xf32> to vector<8x128xf32>
    %28 = vector.extract_strided_slice %20 {offsets = [0, 131], sizes = [8, 128], strides = [1, 1]} : vector<8x384xf32> to vector<8x128xf32>
    %29 = tpu.concatenate %22, %23, %24, %25, %26, %27, %28 in 0 : vector<8x128xf32>, vector<8x128xf32>, vector<8x128xf32>, vector<8x128xf32>, vector<8x128xf32>, vector<8x128xf32>, vector<8x128xf32> -> vector<56x128xf32>
    %cst_11 = arith.constant dense<0.000000e+00> : vector<64x128xf32>
    %30 = tpu.matmul %21, %29, %cst_11 {dimension_numbers = #tpu.dot_dimension_numbers<[1], [0], [0], [1], [0, 0, 1, 1], [], []>} : vector<64x56xf32>, vector<56x128xf32>, vector<64x128xf32> -> vector<64x128xf32>
    %c0_12 = arith.constant 0 : index
    %c0_13 = arith.constant 0 : index
    %31 = vector.load %arg6[%c0_12, %c0_13] : memref<64x1xf32, #tpu.memory_space<vmem>>, vector<64x1xf32>
    %32 = vector.broadcast %31 : vector<64x1xf32> to vector<64x128xf32>
    %33 = arith.addf %30, %32 : vector<64x128xf32>
    %c0_14 = arith.constant 0 : index
    %c0_15 = arith.constant 0 : index
    %c0_16 = arith.constant 0 : index
    %34 = vector.load %arg7[%c0_14, %c0_15, %c0_16] : memref<1x64x128xf32, #tpu.memory_space<vmem>>, vector<1x64x128xf32>
    %35 = vector.shape_cast %34 : vector<1x64x128xf32> to vector<64x128xf32>
    %36 = vector.shape_cast %33 : vector<64x128xf32> to vector<1x64x128xf32>
    tpu.vector_store %arg7[%c0_14, %c0_15, %c0_16], %36 {strides = array<i32>} : memref<1x64x128xf32, #tpu.memory_space<vmem>>, vector<1x64x128xf32>,
    return
  }
  func.func @transform_0(%arg0: i32, %arg1: i32) -> (i32, i32, i32) {
    %c1_i32 = arith.constant 1 : i32
    %0 = arith.muli %arg1, %c1_i32 : i32
    %c1_i32_0 = arith.constant 1 : i32
    %1 = arith.subi %0, %c1_i32_0 : i32
    %c0_i32 = arith.constant 0 : i32
    %c0_i32_1 = arith.constant 0 : i32
    %2 = arith.maxsi %c0_i32, %1 : i32
    %3 = arith.minsi %c0_i32_1, %2 : i32
    %c0_i32_2 = arith.constant 0 : i32
    %c0_i32_3 = arith.constant 0 : i32
    return %arg0, %c0_i32_2, %3 : i32, i32, i32
  }
  func.func @transform_1(%arg0: i32, %arg1: i32) -> (i32, i32, i32) {
    %c0_i32 = arith.constant 0 : i32
    %0 = arith.minsi %arg1, %c0_i32 : i32
    %c0_i32_0 = arith.constant 0 : i32
    %c0_i32_1 = arith.constant 0 : i32
    return %arg0, %c0_i32_0, %0 : i32, i32, i32
  }
  func.func @transform_2(%arg0: i32, %arg1: i32) -> (i32, i32, i32) {
    %c1_i32 = arith.constant 1 : i32
    %0 = arith.addi %arg1, %c1_i32 : i32
    %c1_i32_0 = arith.constant 1 : i32
    %1 = arith.muli %0, %c1_i32_0 : i32
    %c0_i32 = arith.constant 0 : i32
    %2 = arith.minsi %1, %c0_i32 : i32
    %c0_i32_1 = arith.constant 0 : i32
    %c0_i32_2 = arith.constant 0 : i32
    return %arg0, %c0_i32_1, %2 : i32, i32, i32
  }
  func.func @transform_3(%arg0: i32, %arg1: i32) -> (i32, i32) {
    %c0_i32 = arith.constant 0 : i32
    %c0_i32_0 = arith.constant 0 : i32
    %c0_i32_1 = arith.constant 0 : i32
    return %c0_i32, %c0_i32_0 : i32, i32
  }
  func.func @transform_4(%arg0: i32, %arg1: i32) -> (i32, i32) {
    %c0_i32 = arith.constant 0 : i32
    %c0_i32_0 = arith.constant 0 : i32
    %c0_i32_1 = arith.constant 0 : i32
    return %c0_i32, %c0_i32_0 : i32, i32
  }
  func.func @transform_5(%arg0: i32, %arg1: i32) -> (i32, i32, i32) {
    %c0_i32 = arith.constant 0 : i32
    %c0_i32_0 = arith.constant 0 : i32
    return %arg0, %c0_i32, %arg1 : i32, i32, i32
  }
}

</mosaic_0001>

<llo_original>
// kernel: tpu_custom_call.1
$region0: #{tpu_custom_call.1}
  #allocation0 [shape = 'u32[]', space=smem, size = 0x4, offset = 0x4, fixed_abs, tag = 'smem constant byte address 0x4 - core index']
  #allocation1 [shape = 'u32[144,128]{1,0:T(1,128)}', space=vmem, size = 0x12000, scoped, tag = 'internal scratch']
  %s0 = inlined_call_operand.vmem [shape: f32[2,8,50], index: 0, kind: input, shape index: {}]
  %s1 = inlined_call_operand.vmem [shape: f32[2,8,50], index: 1, kind: input, shape index: {}]
  %s2 = inlined_call_operand.vmem [shape: f32[2,8,50], index: 2, kind: input, shape index: {}]
  %s3 = inlined_call_operand.vmem [shape: f32[64,56], index: 3, kind: input, shape index: {}]
  %s4 = inlined_call_operand.vmem [shape: f32[64,1], index: 4, kind: input, shape index: {}]
  %s5 = inlined_call_operand.vmem [shape: f32[2,64,50], index: 5, kind: output, shape index: {}]
  %s6 = sld [smem:[#allocation0]]
  $region53: #{tpu_custom_call.1} parent=0
    _
  %s8 = ssub.s32 1, %s6
  %s9 = scalar_select 0, %s8, %s6
  loop: start=0, step=1, limit=4
  $region2: #{tpu_custom_call.1} parent=0 // loop_pre_header
    _
  $region3: #{tpu_custom_call.1} parent=0 // loop_header
    %s11 = sphi 0, %s15
    %p12 = scmp.ge.s32.totalorder %s11, 4
    %s18 = sphi 0, %s30
    %s19 = sphi 0, %s26
    %s20 = sphi 0, %s18
    %s21 = sphi 0, %s19
    %s22 = sphi 0, %s20
    %s23 = sphi 0, %s21
    %s45 = sphi 0, %s47
    %s48 = sphi 0, %s45
    %s49 = sphi 0, %s48
    %s65 = sphi 0, %s49
    %s77 = sphi 0, %s79
    %s80 = sphi 0, %s77
    %s81 = sphi 0, %s80
    %s97 = sphi 0, %s81
    %s111 = sphi 0, %s113
    %s114 = sphi 0, %s111
    %s115 = sphi 0, %s114
    %s131 = sphi 0, %s115
    %s135 = sphi 0, %s135
    %s137 = sphi 0, %s135
    %s138 = sphi 0, %s137
    %s152 = sphi 0, %s138
    %s156 = sphi 0, %s156
    %s158 = sphi 0, %s156
    %s159 = sphi 0, %s158
    %s173 = sphi 0, %s159
    %s181 = sphi 0, %s183
    %s184 = sphi 0, %s181
    %s185 = sphi 0, %s184
    %s201 = sphi 0, %s185
  $region4: #{tpu_custom_call.1} parent=0 // loop_header_branch
    %14 = sbr.rel (%p12) target = $region8
  $region5: #{tpu_custom_call.1} parent=0 // loop_body
    %s16 = ssub.s32 %s11, 1
    %s17 = ssub.s32 %s11, 2
    %s24 = sadd.s32 1, %s19
    %p25 = scmp.ge.s32.totalorder %s24, 1
    %s26 = scalar_select %p25, 0, %s24
    %s27 = sadd.s32 1, %s18
    %s28 = scalar_select %p25, %s27, %s18
    %p29 = scmp.ge.s32.totalorder %s28, 2
    %s30 = scalar_select %p29, 0, %s28
    %s31 = ssub.s32 %s19, 1
    %p32 = scmp.gt.s32.totalorder %s31, 0
    %s33 = scalar_select %p32, %s31, 0
    %p34 = scmp.lt.s32.totalorder %s33, 0
    %s35 = scalar_select %p34, %s33, 0
    %s36 = ssub.s32 %s26, 1
    %p37 = scmp.gt.s32.totalorder %s36, 0
    %s38 = scalar_select %p37, %s36, 0
    %p39 = scmp.lt.s32.totalorder %s38, 0
    %s40 = scalar_select %p39, %s38, 0
    %s41 = ssub.s32 %s18, %s30
    %s42 = ssub.s32 %s35, %s40
    %s43 = sor.u32 %s41, %s42
    %p44 = scmp.eq.s32.totalorder %s43, 0
    %s46 = sadd.s32 %s45, 1
    %s47 = scalar_select %p44, %s45, %s46
    %p50 = pneg %p44
    %p51 = scmp.eq.s32.totalorder %s11, 1
    %p52 = por %p50, %p51
    %p53 = scmp.ne.s32.totalorder %s45, %s48
    %p54 = scmp.eq.s32.totalorder %s11, 0
    %p55 = por %p53, %p54
    %p56 = scmp.ne.s32.totalorder %s45, %s48
    %p57 = scmp.eq.s32.totalorder %s16, 1
    %p58 = por %p56, %p57
    %p59 = scmp.ne.s32.totalorder %s48, %s49
    %p60 = scmp.eq.s32.totalorder %s16, 0
    %p61 = por %p59, %p60
    %p62 = scmp.ne.s32.totalorder %s48, %s49
    %p63 = scmp.eq.s32.totalorder %s17, 1
    %p64 = por %p62, %p63
    %p66 = scmp.ne.s32.totalorder %s49, %s65
    %p67 = scmp.eq.s32.totalorder %s17, 0
    %p68 = por %p66, %p67
    %p69 = scmp.lt.s32.totalorder %s19, 0
    %s70 = scalar_select %p69, %s19, 0
    %p71 = scmp.lt.s32.totalorder %s26, 0
    %s72 = scalar_select %p71, %s26, 0
    %s73 = ssub.s32 %s18, %s30
    %s74 = ssub.s32 %s70, %s72
    %s75 = sor.u32 %s73, %s74
    %p76 = scmp.eq.s32.totalorder %s75, 0
    %s78 = sadd.s32 %s77, 1
    %s79 = scalar_select %p76, %s77, %s78
    %p82 = pneg %p76
    %p83 = scmp.eq.s32.totalorder %s11, 1
    %p84 = por %p82, %p83
    %p85 = scmp.ne.s32.totalorder %s77, %s80
    %p86 = scmp.eq.s32.totalorder %s11, 0
    %p87 = por %p85, %p86
    %p88 = scmp.ne.s32.totalorder %s77, %s80
    %p89 = scmp.eq.s32.totalorder %s16, 1
    %p90 = por %p88, %p89
    %p91 = scmp.ne.s32.totalorder %s80, %s81
    %p92 = scmp.eq.s32.totalorder %s16, 0
    %p93 = por %p91, %p92
    %p94 = scmp.ne.s32.totalorder %s80, %s81
    %p95 = scmp.eq.s32.totalorder %s17, 1
    %p96 = por %p94, %p95
    %p98 = scmp.ne.s32.totalorder %s81, %s97
    %p99 = scmp.eq.s32.totalorder %s17, 0
    %p100 = por %p98, %p99
    %s101 = sadd.s32 %s19, 1
    %p102 = scmp.lt.s32.totalorder %s101, 0
    %s103 = scalar_select %p102, %s101, 0
    %s104 = sadd.s32 %s26, 1
    %p105 = scmp.lt.s32.totalorder %s104, 0
    %s106 = scalar_select %p105, %s104, 0
    %s107 = ssub.s32 %s18, %s30
    %s108 = ssub.s32 %s103, %s106
    %s109 = sor.u32 %s107, %s108
    %p110 = scmp.eq.s32.totalorder %s109, 0
    %s112 = sadd.s32 %s111, 1
    %s113 = scalar_select %p110, %s111, %s112
    %p116 = pneg %p110
    %p117 = scmp.eq.s32.totalorder %s11, 1
    %p118 = por %p116, %p117
    %p119 = scmp.ne.s32.totalorder %s111, %s114
    %p120 = scmp.eq.s32.totalorder %s11, 0
    %p121 = por %p119, %p120
    %p122 = scmp.ne.s32.totalorder %s111, %s114
    %p123 = scmp.eq.s32.totalorder %s16, 1
    %p124 = por %p122, %p123
    %p125 = scmp.ne.s32.totalorder %s114, %s115
    %p126 = scmp.eq.s32.totalorder %s16, 0
    %p127 = por %p125, %p126
    %p128 = scmp.ne.s32.totalorder %s114, %s115
    %p129 = scmp.eq.s32.totalorder %s17, 1
    %p130 = por %p128, %p129
    %p132 = scmp.ne.s32.totalorder %s115, %s131
    %p133 = scmp.eq.s32.totalorder %s17, 0
    %p134 = por %p132, %p133
    %s136 = sadd.s32 %s135, 1
    %p139 = scmp.eq.s32.totalorder %s11, 1
    %p140 = scmp.ne.s32.totalorder %s135, %s137
    %p141 = scmp.eq.s32.totalorder %s11, 0
    %p142 = por %p140, %p141
    %p143 = scmp.ne.s32.totalorder %s135, %s137
    %p144 = scmp.eq.s32.totalorder %s16, 1
    %p145 = por %p143, %p144
    %p146 = scmp.ne.s32.totalorder %s137, %s138
    %p147 = scmp.eq.s32.totalorder %s16, 0
    %p148 = por %p146, %p147
    %p149 = scmp.ne.s32.totalorder %s137, %s138
    %p150 = scmp.eq.s32.totalorder %s17, 1
    %p151 = por %p149, %p150
    %p153 = scmp.ne.s32.totalorder %s138, %s152
    %p154 = scmp.eq.s32.totalorder %s17, 0
    %p155 = por %p153, %p154
    %s157 = sadd.s32 %s156, 1
    %p160 = scmp.eq.s32.totalorder %s11, 1
    %p161 = scmp.ne.s32.totalorder %s156, %s158
    %p162 = scmp.eq.s32.totalorder %s11, 0
    %p163 = por %p161, %p162
    %p164 = scmp.ne.s32.totalorder %s156, %s158
    %p165 = scmp.eq.s32.totalorder %s16, 1
    %p166 = por %p164, %p165
    %p167 = scmp.ne.s32.totalorder %s158, %s159
    %p168 = scmp.eq.s32.totalorder %s16, 0
    %p169 = por %p167, %p168
    %p170 = scmp.ne.s32.totalorder %s158, %s159
    %p171 = scmp.eq.s32.totalorder %s17, 1
    %p172 = por %p170, %p171
    %p174 = scmp.ne.s32.totalorder %s159, %s173
    %p175 = scmp.eq.s32.totalorder %s17, 0
    %p176 = por %p174, %p175
    %s177 = ssub.s32 %s18, %s30
    %s178 = ssub.s32 %s19, %s26
    %s179 = sor.u32 %s177, %s178
    %p180 = scmp.eq.s32.totalorder %s179, 0
    %s182 = sadd.s32 %s181, 1
    %s183 = scalar_select %p180, %s181, %s182
    %p186 = pneg %p180
    %p187 = scmp.eq.s32.totalorder %s11, 1
    %p188 = por %p186, %p187
    %p189 = scmp.ne.s32.totalorder %s181, %s184
    %p190 = scmp.eq.s32.totalorder %s11, 0
    %p191 = por %p189, %p190
    %p192 = scmp.ne.s32.totalorder %s181, %s184
    %p193 = scmp.eq.s32.totalorder %s16, 1
    %p194 = por %p192, %p193
    %p195 = scmp.ne.s32.totalorder %s184, %s185
    %p196 = scmp.eq.s32.totalorder %s16, 0
    %p197 = por %p195, %p196
    %p198 = scmp.ne.s32.totalorder %s184, %s185
    %p199 = scmp.eq.s32.totalorder %s17, 1
    %p200 = por %p198, %p199
    %p202 = scmp.ne.s32.totalorder %s185, %s201
    %p203 = scmp.eq.s32.totalorder %s17, 0
    %p204 = por %p202, %p203
    %p205 = scmp.le.s32.totalorder 1, %s11
    %p206 = scmp.lt.s32.totalorder %s11, 3
    %p207 = pnand %p205, %p206
    %p208 = pneg %p207
    // Predicated region
    $region9: #{tpu_custom_call.1} parent=5 // pred_check
      _
    $region10: #{tpu_custom_call.1} parent=5 // pred_check_branch
      %210 = sbr.rel (%p207) target = $region12
    $region11: #{tpu_custom_call.1} parent=5 // pred_region
      %s211 = ssub.s32 %s11, 1
      // Predicated region
      $region13: #{tpu_custom_call.1} parent=11 // pred_check
        %p212 = pneg %p148
      $region14: #{tpu_custom_call.1} parent=11 // pred_check_branch
        %214 = sbr.rel (%p212) target = $region16
      $region15: #{tpu_custom_call.1} parent=11 // pred_region
        _
      $region16: #{tpu_custom_call.1} parent=11 // pred_fallthru
        _
      // Predicated region
      $region17: #{tpu_custom_call.1} parent=11 // pred_check
        %p215 = pneg %p169
      $region18: #{tpu_custom_call.1} parent=11 // pred_check_branch
        %217 = sbr.rel (%p215) target = $region20
      $region19: #{tpu_custom_call.1} parent=11 // pred_region
        _
      $region20: #{tpu_custom_call.1} parent=11 // pred_fallthru
        _
    $region12: #{tpu_custom_call.1} parent=5 // pred_fallthru
      _
    %p218 = scmp.lt.s32.totalorder %s11, 2
    // Predicated region
    $region21: #{tpu_custom_call.1} parent=5 // pred_check
      %p219 = pneg %p218
    $region22: #{tpu_custom_call.1} parent=5 // pred_check_branch
      %221 = sbr.rel (%p219) target = $region24
    $region23: #{tpu_custom_call.1} parent=5 // pred_region
      // Predicated region
      $region25: #{tpu_custom_call.1} parent=23 // pred_check
        %p222 = pneg %p55
      $region26: #{tpu_custom_call.1} parent=23 // pred_check_branch
        %224 = sbr.rel (%p222) target = $region28
      $region27: #{tpu_custom_call.1} parent=23 // pred_region
        %s225 = ssub.s32 %s19, 1
        %p226 = scmp.gt.s32.totalorder %s225, 0
        %s227 = scalar_select %p226, %s225, 0
        %p228 = scmp.lt.s32.totalorder %s227, 0
        %s229 = scalar_select %p228, %s227, 0
        %p230 = scmp.lt.s32.totalorder %s18, 1
        %s231 = scalar_select %p230, %s18, 1
        %p232 = scmp.lt.s32.totalorder %s229, 0
        %s233 = scalar_select %p232, %s229, 0
        %s234 = sadd.s32 %s233, %s231
        %s235 = smul.addr %s234, 8
        %s236 = scalar_lea.vmem %s0, %s235
        %s237 = ssub.s32 %s19, 1
        %p238 = scmp.gt.s32.totalorder %s237, 0
        %s239 = scalar_select %p238, %s237, 0
        %p240 = scmp.lt.s32.totalorder %s239, 0
        %s241 = scalar_select %p240, %s239, 0
      $region28: #{tpu_custom_call.1} parent=23 // pred_fallthru
        _
      // Predicated region
      $region29: #{tpu_custom_call.1} parent=23 // pred_check
        %p242 = pneg %p87
      $region30: #{tpu_custom_call.1} parent=23 // pred_check_branch
        %244 = sbr.rel (%p242) target = $region32
      $region31: #{tpu_custom_call.1} parent=23 // pred_region
        %p245 = scmp.lt.s32.totalorder %s19, 0
        %s246 = scalar_select %p245, %s19, 0
        %p247 = scmp.lt.s32.totalorder %s18, 1
        %s248 = scalar_select %p247, %s18, 1
        %p249 = scmp.lt.s32.totalorder %s246, 0
        %s250 = scalar_select %p249, %s246, 0
        %s251 = sadd.s32 %s250, %s248
        %s252 = smul.addr %s251, 8
        %s253 = scalar_lea.vmem %s1, %s252
        %p254 = scmp.lt.s32.totalorder %s19, 0
        %s255 = scalar_select %p254, %s19, 0
      $region32: #{tpu_custom_call.1} parent=23 // pred_fallthru
        _
      // Predicated region
      $region33: #{tpu_custom_call.1} parent=23 // pred_check
        %p256 = pneg %p121
      $region34: #{tpu_custom_call.1} parent=23 // pred_check_branch
        %258 = sbr.rel (%p256) target = $region36
      $region35: #{tpu_custom_call.1} parent=23 // pred_region
        %s259 = sadd.s32 %s19, 1
        %p260 = scmp.lt.s32.totalorder %s259, 0
        %s261 = scalar_select %p260, %s259, 0
        %p262 = scmp.lt.s32.totalorder %s18, 1
        %s263 = scalar_select %p262, %s18, 1
        %p264 = scmp.lt.s32.totalorder %s261, 0
        %s265 = scalar_select %p264, %s261, 0
        %s266 = sadd.s32 %s265, %s263
        %s267 = smul.addr %s266, 8
        %s268 = scalar_lea.vmem %s2, %s267
        %s269 = sadd.s32 %s19, 1
        %p270 = scmp.lt.s32.totalorder %s269, 0
        %s271 = scalar_select %p270, %s269, 0
      $region36: #{tpu_custom_call.1} parent=23 // pred_fallthru
        _
    $region24: #{tpu_custom_call.1} parent=5 // pred_fallthru
      _
    %p272 = scmp.le.s32.totalorder 1, %s11
    %p273 = scmp.lt.s32.totalorder %s11, 3
    %p274 = pnand %p272, %p273
    %p275 = pneg %p274
    // Predicated region
    $region37: #{tpu_custom_call.1} parent=5 // pred_check
      _
    $region38: #{tpu_custom_call.1} parent=5 // pred_check_branch
      %277 = sbr.rel (%p274) target = $region40
    $region39: #{tpu_custom_call.1} parent=5 // pred_region
      %s278 = ssub.s32 %s11, 1
      %s279 = ssub.s32 %s21, 1
      %p280 = scmp.gt.s32.totalorder %s279, 0
      %s281 = scalar_select %p280, %s279, 0
      %p282 = scmp.lt.s32.totalorder %s281, 0
      %s283 = scalar_select %p282, %s281, 0
      %p284 = scmp.lt.s32.totalorder %s20, 1
      %s285 = scalar_select %p284, %s20, 1
      %p286 = scmp.lt.s32.totalorder %s283, 0
      %s287 = scalar_select %p286, %s283, 0
      %s288 = sadd.s32 %s287, %s285
      %s289 = smul.addr %s288, 8
      %s290 = scalar_lea.vmem %s0, %s289
      %p291 = pneg %p61
      %p292 = pneg %p58
      %p293 = scmp.lt.s32.totalorder %s21, 0
      %s294 = scalar_select %p293, %s21, 0
      %p295 = scmp.lt.s32.totalorder %s20, 1
      %s296 = scalar_select %p295, %s20, 1
      %p297 = scmp.lt.s32.totalorder %s294, 0
      %s298 = scalar_select %p297, %s294, 0
      %s299 = sadd.s32 %s298, %s296
      %s300 = smul.addr %s299, 8
      %s301 = scalar_lea.vmem %s1, %s300
      %p302 = pneg %p93
      %p303 = pneg %p90
      %s304 = sadd.s32 %s21, 1
      %p305 = scmp.lt.s32.totalorder %s304, 0
      %s306 = scalar_select %p305, %s304, 0
      %p307 = scmp.lt.s32.totalorder %s20, 1
      %s308 = scalar_select %p307, %s20, 1
      %p309 = scmp.lt.s32.totalorder %s306, 0
      %s310 = scalar_select %p309, %s306, 0
      %s311 = sadd.s32 %s310, %s308
      %s312 = smul.addr %s311, 8
      %s313 = scalar_lea.vmem %s2, %s312
      %p314 = pneg %p127
      %p315 = pneg %p124
      %p316 = pneg %p148
      %p317 = pneg %p145
      %p318 = pneg %p169
      %p319 = pneg %p166
      %p320 = pneg %p197
      %p321 = pneg %p194
      %p322 = scmp.lt.s32.totalorder %s20, 1
      %s323 = scalar_select %p322, %s20, 1
      %p324 = scmp.lt.s32.totalorder %s21, 0
      %s325 = scalar_select %p324, %s21, 0
      %s326 = smul.addr %s323, 8
      %s327 = sadd.s32 %s325, %s326
      %s328 = smul.addr %s327, 8
      %s329 = scalar_lea.vmem %s5, %s328
      %s330 = ssub.s32 %s21, 1
      %p331 = scmp.gt.s32.totalorder %s330, 0
      %s332 = scalar_select %p331, %s330, 0
      %p333 = scmp.lt.s32.totalorder %s332, 0
      %s334 = scalar_select %p333, %s332, 0
      %p335 = scmp.lt.s32.totalorder %s20, 1
      %s336 = scalar_select %p335, %s20, 1
      %p337 = scmp.lt.s32.totalorder %s334, 0
      %s338 = scalar_select %p337, %s334, 0
      %s339 = sadd.s32 %s338, %s336
      %s340 = smul.addr %s339, 8
      %s341 = scalar_lea.vmem %s0, %s340
      %s342 = ssub.s32 %s21, 1
      %p343 = scmp.gt.s32.totalorder %s342, 0
      %s344 = scalar_select %p343, %s342, 0
      %p345 = scmp.lt.s32.totalorder %s344, 0
      %s346 = scalar_select %p345, %s344, 0
      %p347 = scmp.lt.s32.totalorder %s21, 0
      %s348 = scalar_select %p347, %s21, 0
      %p349 = scmp.lt.s32.totalorder %s20, 1
      %s350 = scalar_select %p349, %s20, 1
      %p351 = scmp.lt.s32.totalorder %s348, 0
      %s352 = scalar_select %p351, %s348, 0
      %s353 = sadd.s32 %s352, %s350
      %s354 = smul.addr %s353, 8
      %s355 = scalar_lea.vmem %s1, %s354
      %p356 = scmp.lt.s32.totalorder %s21, 0
      %s357 = scalar_select %p356, %s21, 0
      %s358 = sadd.s32 %s21, 1
      %p359 = scmp.lt.s32.totalorder %s358, 0
      %s360 = scalar_select %p359, %s358, 0
      %p361 = scmp.lt.s32.totalorder %s20, 1
      %s362 = scalar_select %p361, %s20, 1
      %p363 = scmp.lt.s32.totalorder %s360, 0
      %s364 = scalar_select %p363, %s360, 0
      %s365 = sadd.s32 %s364, %s362
      %s366 = smul.addr %s365, 8
      %s367 = scalar_lea.vmem %s2, %s366
      %s368 = sadd.s32 %s21, 1
      %p369 = scmp.lt.s32.totalorder %s368, 0
      %s370 = scalar_select %p369, %s368, 0
      %p371 = scmp.lt.s32.totalorder %s20, 1
      %s372 = scalar_select %p371, %s20, 1
      %p373 = scmp.lt.s32.totalorder %s21, 0
      %s374 = scalar_select %p373, %s21, 0
      %s375 = smul.addr %s372, 8
      %s376 = sadd.s32 %s374, %s375
      %s377 = smul.addr %s376, 8
      %s378 = scalar_lea.vmem %s5, %s377
      %v379 = vld [vmem:[%s341] sm:$0xff]
      %v380 = vld [vmem:[%s355] sm:$0xff]
      %v381 = vld [vmem:[%s367] sm:$0xff]
      %s382 = smul.u32 %s21, 128
      %s383 = ssub.s32 %s382, 128
      %v384 = vlaneseq
      %v385 = vand.u32 %v384, 127
      %v386 = vadd.s32 %v385, 128
      %v387 = vadd.s32 %v385, 256
      %v388 = vstv %s383
      %v389 = vadd.s32 %v388, %v385
      %v390 = vadd.s32 %v388, %v386
      %v391 = vadd.s32 %v388, %v387
      %vm392 = vcmp.ge.s32.totalorder %v389, 0
      %vm393 = vcmp.ge.s32.totalorder %v390, 0
      %vm394 = vcmp.ge.s32.totalorder %v391, 0
      %vm395 = vcmp.lt.s32.totalorder %v389, 50
      %vm396 = vcmp.lt.s32.totalorder %v390, 50
      %vm397 = vcmp.lt.s32.totalorder %v391, 50
      %vm398 = vmand %vm392, %vm395
      %vm399 = vmand %vm393, %vm396
      %vm400 = vmand %vm394, %vm397
      %v401 = vsel %vm398, 1, 0
      %v402 = vsel %vm399, 1, 0
      %v403 = vsel %vm400, 1, 0
      %vm404 = vcmp.eq.s32.totalorder %v401, 1
      %vm405 = vcmp.eq.s32.totalorder %v402, 1
      %vm406 = vcmp.eq.s32.totalorder %v403, 1
      %v407 = vsel %vm404, %v379, 0.0
      %v408 = vsel %vm405, %v380, 0.0
      %v409 = vsel %vm406, %v381, 0.0
      %v410 = vld [vmem:[%s3] sm:$0xff]
      %v411 = vld [vmem:[%s3 + $0x8] sm:$0xff]
      %v412 = vld [vmem:[%s3 + $0x10] sm:$0xff]
      %v413 = vld [vmem:[%s3 + $0x18] sm:$0xff]
      %v414 = vld [vmem:[%s3 + $0x20] sm:$0xff]
      %v415 = vld [vmem:[%s3 + $0x28] sm:$0xff]
      %v416 = vld [vmem:[%s3 + $0x30] sm:$0xff]
      %v417 = vld [vmem:[%s3 + $0x38] sm:$0xff]
      %420 = vrot.lane.b32.xlu0 %v407, 127
      %v421 = vpop.permute.xlu0 %420
      %422 = vrot.lane.b32.xlu0 %v408, 127
      %v423 = vpop.permute.xlu0 %422
      %vm424 = vcmask 1039360
      %v425 = vsel %vm424, %v421, %v423
      %426 = vrot.lane.b32.xlu0 %v407, 126
      %v427 = vpop.permute.xlu0 %426
      %428 = vrot.lane.b32.xlu0 %v408, 126
      %v429 = vpop.permute.xlu0 %428
      %vm430 = vcmask 1031168
      %v431 = vsel %vm430, %v427, %v429
      %432 = vrot.lane.b32.xlu0 %v408, 125
      %v433 = vpop.permute.xlu0 %432
      %435 = vrot.lane.b32.xlu0 %v408, 124
      %v436 = vpop.permute.xlu0 %435
      %437 = vrot.lane.b32.xlu0 %v409, 124
      %v438 = vpop.permute.xlu0 %437
      %vm439 = vcmask 1014784
      %v440 = vsel %vm439, %v436, %v438
      %441 = vrot.lane.b32.xlu0 %v408, 123
      %v442 = vpop.permute.xlu0 %441
      %443 = vrot.lane.b32.xlu0 %v409, 123
      %v444 = vpop.permute.xlu0 %443
      %vm445 = vcmask 1006592
      %v446 = vsel %vm445, %v442, %v444
      %447 = vrot.lane.b32.xlu0 %v408, 122
      %v448 = vpop.permute.xlu0 %447
      %449 = vrot.lane.b32.xlu0 %v409, 122
      %v450 = vpop.permute.xlu0 %449
      %vm451 = vcmask 998400
      %v452 = vsel %vm451, %v448, %v450
      %v453 = vld [vmem:[%s4] sm:$0xff]
      %v454 = vld [vmem:[%s4 + $0x8] sm:$0xff]
      %v455 = vld [vmem:[%s4 + $0x10] sm:$0xff]
      %v456 = vld [vmem:[%s4 + $0x18] sm:$0xff]
      %v457 = vld [vmem:[%s4 + $0x20] sm:$0xff]
      %v458 = vld [vmem:[%s4 + $0x28] sm:$0xff]
      %v459 = vld [vmem:[%s4 + $0x30] sm:$0xff]
      %v460 = vld [vmem:[%s4 + $0x38] sm:$0xff]
      %462 = vset.pattern.permute.xlu0 0
      %463 = vperm.xlu0 %462, %v453
      %v464 = vpop.permute.xlu0 %463
      %467 = vset.pattern.permute.xlu0 0
      %468 = vperm.xlu0 %467, %v454
      %v469 = vpop.permute.xlu0 %468
      %472 = vset.pattern.permute.xlu0 0
      %473 = vperm.xlu0 %472, %v455
      %v474 = vpop.permute.xlu0 %473
      %477 = vset.pattern.permute.xlu0 0
      %478 = vperm.xlu0 %477, %v456
      %v479 = vpop.permute.xlu0 %478
      %482 = vset.pattern.permute.xlu0 0
      %483 = vperm.xlu0 %482, %v457
      %v484 = vpop.permute.xlu0 %483
      %487 = vset.pattern.permute.xlu0 0
      %488 = vperm.xlu0 %487, %v458
      %v489 = vpop.permute.xlu0 %488
      %492 = vset.pattern.permute.xlu0 0
      %493 = vperm.xlu0 %492, %v459
      %v494 = vpop.permute.xlu0 %493
      %497 = vset.pattern.permute.xlu0 0
      %498 = vperm.xlu0 %497, %v460
      %v499 = vpop.permute.xlu0 %498
      %501 = vrot.lane.b32.xlu0 %v407, 3
      %v502 = vpop.permute.xlu0 %501
      %503 = vrot.lane.b32.xlu0 %v408, 3
      %v504 = vpop.permute.xlu0 %503
      %505 = vrot.lane.b32.xlu0 %v425, 3
      %v506 = vpop.permute.xlu0 %505
      %507 = vrot.lane.b32.xlu0 %v423, 3
      %v508 = vpop.permute.xlu0 %507
      %509 = vrot.lane.b32.xlu0 %v431, 3
      %v510 = vpop.permute.xlu0 %509
      %511 = vrot.lane.b32.xlu0 %v429, 3
      %v512 = vpop.permute.xlu0 %511
      %513 = vrot.lane.b32.xlu0 %v433, 3
      %v514 = vpop.permute.xlu0 %513
      %515 = vrot.lane.b32.xlu0 %v436, 3
      %v516 = vpop.permute.xlu0 %515
      %517 = vrot.lane.b32.xlu0 %v440, 3
      %v518 = vpop.permute.xlu0 %517
      %519 = vrot.lane.b32.xlu0 %v442, 3
      %v520 = vpop.permute.xlu0 %519
      %521 = vrot.lane.b32.xlu0 %v446, 3
      %v522 = vpop.permute.xlu0 %521
      %523 = vrot.lane.b32.xlu0 %v448, 3
      %v524 = vpop.permute.xlu0 %523
      %525 = vrot.lane.b32.xlu0 %v452, 3
      %v526 = vpop.permute.xlu0 %525
      %vm527 = vcmask 23552
      %v528 = vsel %vm527, %v502, %v504
      %v529 = vsel %vm527, %v506, %v508
      %v530 = vsel %vm527, %v510, %v512
      %v531 = vsel %vm527, %v516, %v518
      %v532 = vsel %vm527, %v520, %v522
      %v533 = vsel %vm527, %v524, %v526
      %vm541 = vcmask 457728
      %v543 = vsel %vm541, %v410, 0
      %v546 = vsel %vm541, %v411, 0
      %v549 = vsel %vm541, %v412, 0
      %v552 = vsel %vm541, %v413, 0
      %v555 = vsel %vm541, %v414, 0
      %v558 = vsel %vm541, %v415, 0
      %v561 = vsel %vm541, %v416, 0
      %v564 = vsel %vm541, %v417, 0
      %566 = vmatprep.subr.mxu0 0.0
      %567 = vmatpush1.msra.mxu0 %v528
      %568 = vmatprep.subr.mxu0 0.0
      %569 = vmatpush1.msra.mxu0 %v529
      %570 = vmatprep.subr.mxu0 0.0
      %571 = vmatpush1.msra.mxu0 %v530
      %572 = vmatprep.subr.mxu0 0.0
      %573 = vmatpush1.msra.mxu0 %v514
      %574 = vmatprep.subr.mxu0 0.0
      %575 = vmatpush1.msra.mxu0 %v531
      %576 = vmatprep.subr.mxu0 0.0
      %577 = vmatpush1.msra.mxu0 %v532
      %578 = vmatprep.subr.mxu0 0.0
      %579 = vmatpush1.msra.mxu0 %v533
      %580 = vmatprep.subr.mxu0 0.0
      %581 = vmatpush1.msra.mxu0 0.0
      %582 = vmatprep.subr.mxu0 0.0
      %583 = vmatpush1.msra.mxu0 0.0
      %584 = vmatprep.subr.mxu0 0.0
      %585 = vmatpush1.msra.mxu0 0.0
      %586 = vmatprep.subr.mxu0 0.0
      %587 = vmatpush1.msra.mxu0 0.0
      %588 = vmatprep.subr.mxu0 0.0
      %589 = vmatpush1.msra.mxu0 0.0
      %590 = vmatprep.subr.mxu0 0.0
      %591 = vmatpush1.msra.mxu0 0.0
      %592 = vmatprep.subr.mxu0 0.0
      %593 = vmatpush1.msra.mxu0 0.0
      %594 = vmatprep.subr.mxu0 0.0
      %595 = vmatpush1.msra.mxu0 0.0
      %596 = vmatprep.subr.mxu0 0.0
      %597 = vmatpush1.msra.mxu0 0.0
      %598 = vmatprep.subr.mxu0 0.0
      %599 = vmatpush1.msra.mxu0 0.0
      %600 = vmatprep.subr.mxu0 0.0
      %601 = vmatpush1.msra.mxu0 0.0
      %602 = vmatprep.subr.mxu0 0.0
      %603 = vmatpush1.msra.mxu0 0.0
      %604 = vmatprep.subr.mxu0 0.0
      %605 = vmatpush1.msra.mxu0 0.0
      %606 = vmatprep.subr.mxu0 0.0
      %607 = vmatpush1.msra.mxu0 0.0
      %608 = vmatprep.subr.mxu0 0.0
      %609 = vmatpush1.msra.mxu0 0.0
      %610 = vmatprep.subr.mxu0 0.0
      %611 = vmatpush1.msra.mxu0 0.0
      %612 = vmatprep.subr.mxu0 0.0
      %613 = vmatpush1.msra.mxu0 0.0
      %614 = vmatprep.subr.mxu0 0.0
      %615 = vmatpush1.msra.mxu0 0.0
      %616 = vmatprep.subr.mxu0 0.0
      %617 = vmatpush1.msra.mxu0 0.0
      %618 = vmatprep.subr.mxu0 0.0
      %619 = vmatpush1.msra.mxu0 0.0
      %620 = vmatprep.subr.mxu0 0.0
      %621 = vmatpush1.msra.mxu0 0.0
      %622 = vmatprep.subr.mxu0 0.0
      %623 = vmatpush1.msra.mxu0 0.0
      %624 = vmatprep.subr.mxu0 0.0
      %625 = vmatpush1.msra.mxu0 0.0
      %626 = vmatprep.subr.mxu0 0.0
      %627 = vmatpush1.msra.mxu0 0.0
      %628 = vmatprep.subr.mxu0 0.0
      %629 = vmatpush1.msra.mxu0 0.0
      %630 = vmatprep.mubr.f32.mxu0 0.0
      %631 = vmatmul.mubr.f32.gmra.mrb[0].mxu0 %v543
      %v632 = vpop.f32.mrb[0].mxu0
      %v633 = vadd.f32 %v464, %v632
      %v634 = vpop.f32.mrb[0].mxu0
      %635 = vmatprep.mubr.f32.mxu0 0.0
      %636 = vmatmul.mubr.f32.gmra.mrb[0].mxu0 %v546
      %v637 = vpop.f32.mrb[0].mxu0
      %v638 = vadd.f32 %v469, %v637
      %v639 = vpop.f32.mrb[0].mxu0
      %640 = vmatprep.mubr.f32.mxu0 0.0
      %641 = vmatmul.mubr.f32.gmra.mrb[0].mxu0 %v549
      %v642 = vpop.f32.mrb[0].mxu0
      %v643 = vadd.f32 %v474, %v642
      %v644 = vpop.f32.mrb[0].mxu0
      %645 = vmatprep.mubr.f32.mxu0 0.0
      %646 = vmatmul.mubr.f32.gmra.mrb[0].mxu0 %v552
      %v647 = vpop.f32.mrb[0].mxu0
      %v648 = vadd.f32 %v479, %v647
      %v649 = vpop.f32.mrb[0].mxu0
      %650 = vmatprep.mubr.f32.mxu0 0.0
      %651 = vmatmul.mubr.f32.gmra.mrb[0].mxu0 %v555
      %v652 = vpop.f32.mrb[0].mxu0
      %v653 = vadd.f32 %v484, %v652
      %v654 = vpop.f32.mrb[0].mxu0
      %655 = vmatprep.mubr.f32.mxu0 0.0
      %656 = vmatmul.mubr.f32.gmra.mrb[0].mxu0 %v558
      %v657 = vpop.f32.mrb[0].mxu0
      %v658 = vadd.f32 %v489, %v657
      %v659 = vpop.f32.mrb[0].mxu0
      %660 = vmatprep.mubr.f32.mxu0 0.0
      %661 = vmatmul.mubr.f32.gmra.mrb[0].mxu0 %v561
      %v662 = vpop.f32.mrb[0].mxu0
      %v663 = vadd.f32 %v494, %v662
      %v664 = vpop.f32.mrb[0].mxu0
      %665 = vmatprep.mubr.f32.mxu0 0.0
      %666 = vmatmul.mubr.f32.gmra.mrb[0].mxu0 %v564
      %v667 = vpop.f32.mrb[0].mxu0
      %v668 = vadd.f32 %v499, %v667
      %v669 = vpop.f32.mrb[0].mxu0
      %670 = vdwg.mxu0
      %671 = vst [vmem:[%s378] sm:$0xff] %v633
      %672 = vst [vmem:[%s378 + $0x8] sm:$0xff] %v638
      %673 = vst [vmem:[%s378 + $0x10] sm:$0xff] %v643
      %674 = vst [vmem:[%s378 + $0x18] sm:$0xff] %v648
      %675 = vst [vmem:[%s378 + $0x20] sm:$0xff] %v653
      %676 = vst [vmem:[%s378 + $0x28] sm:$0xff] %v658
      %677 = vst [vmem:[%s378 + $0x30] sm:$0xff] %v663
      %678 = vst [vmem:[%s378 + $0x38] sm:$0xff] %v668
      %p679 = scmp.lt.s32.totalorder %s20, 1
      %s680 = scalar_select %p679, %s20, 1
      %p681 = scmp.lt.s32.totalorder %s21, 0
      %s682 = scalar_select %p681, %s21, 0
      %s683 = smul.addr %s680, 8
      %s684 = sadd.s32 %s682, %s683
      %s685 = smul.addr %s684, 8
      %s686 = scalar_lea.vmem %s5, %s685
      // Predicated region
      $region41: #{tpu_custom_call.1} parent=39 // pred_check
        %p687 = pneg %p194
      $region42: #{tpu_custom_call.1} parent=39 // pred_check_branch
        %689 = sbr.rel (%p687) target = $region44
      $region43: #{tpu_custom_call.1} parent=39 // pred_region
        _
      $region44: #{tpu_custom_call.1} parent=39 // pred_fallthru
        _
    $region40: #{tpu_custom_call.1} parent=5 // pred_fallthru
      _
    %p690 = scmp.le.s32.totalorder 2, %s11
    // Predicated region
    $region45: #{tpu_custom_call.1} parent=5 // pred_check
      %p691 = pneg %p690
    $region46: #{tpu_custom_call.1} parent=5 // pred_check_branch
      %693 = sbr.rel (%p691) target = $region48
    $region47: #{tpu_custom_call.1} parent=5 // pred_region
      %s694 = ssub.s32 %s11, 2
      // Predicated region
      $region49: #{tpu_custom_call.1} parent=47 // pred_check
        %p695 = pneg %p200
      $region50: #{tpu_custom_call.1} parent=47 // pred_check_branch
        %697 = sbr.rel (%p695) target = $region52
      $region51: #{tpu_custom_call.1} parent=47 // pred_region
        %p698 = scmp.lt.s32.totalorder %s22, 1
        %s699 = scalar_select %p698, %s22, 1
        %p700 = scmp.lt.s32.totalorder %s23, 0
        %s701 = scalar_select %p700, %s23, 0
        %s702 = smul.addr %s699, 8
        %s703 = sadd.s32 %s701, %s702
        %s704 = smul.addr %s703, 8
        %s705 = scalar_lea.vmem %s5, %s704
      $region52: #{tpu_custom_call.1} parent=47 // pred_fallthru
        _
    $region48: #{tpu_custom_call.1} parent=5 // pred_fallthru
      _
  $region6: #{tpu_custom_call.1} parent=0 // loop_footer
    %s15 = sadd.s32 1, %s11
  $region7: #{tpu_custom_call.1} parent=0 // loop_footer_branch
    %10 = sbr.rel target = $region3
  $region8: #{tpu_custom_call.1} parent=0 // loop_exit
    _

</llo_original>
